<compile_context>
chip_gen: v7x
topology: tpu7x:2x2x1
jax: 0.10.0
libtpu: 0.0.40
codegen_flags: <defaults>
</compile_context>

<pallas_src>
import jax
import jax.numpy as jnp
from jax.experimental import pallas as pl
from jax.experimental.pallas import tpu as pltpu

_LANES = 128
_SUBLANES = 8
# Fast-path threshold.  This op is trivially fusable, so real deployments
# should benchmark Pallas vs fused XLA at their loss sizes and raise this
# (XLA already hits HBM roofline with no custom-call overhead).  Kept modest
# here so the demo below exercises the Pallas path at small shapes.
_SMALL_N = _SUBLANES * _LANES          # 1024 elements
_MAX_TILE_ROWS = 4096                  # 4096 x 128 f32 = 2 MiB per buffer
_MIN_GRID_STEPS = 4                    # keep >=4 blocks: 2 TCs x double-buffer


def _round_up(x: int, m: int) -> int:
    return ((x + m - 1) // m) * m


def _dlw_kernel(params_ref, loss_ref, out_ref):
    # params_ref: SMEM f32[2] = [exp(-w), w]; loss_ref/out_ref: VMEM row tiles.
    scale = params_ref[0]
    w = params_ref[1]
    x = loss_ref[...].astype(jnp.float32)
    out_ref[...] = (x * scale + w).astype(out_ref.dtype)


def _xla_path(loss, w0, out_dtype):
    # Fused XLA elementwise — used for tiny losses and ragged (non-128-
    # divisible) sizes to avoid pad/slice extra HBM passes.
    return (loss.astype(jnp.float32) * jnp.exp(-w0) + w0).astype(out_dtype)


def _dlw_forward(loss, loss_weight, max_tile_rows: int = _MAX_TILE_ROWS):
    loss = jnp.asarray(loss)
    w0 = jnp.asarray(loss_weight, dtype=jnp.float32).reshape(())
    out_dtype = jnp.result_type(loss.dtype, jnp.float32)  # torch-style promotion

    orig_shape = loss.shape
    n = loss.size

    if n == 0:
        return jnp.zeros(orig_shape, out_dtype)

    # Small losses, or flat length not divisible by 128: fused XLA path.
    # (Padding + tail-slicing would add two full extra HBM passes.)
    if n <= _SMALL_N or (n % _LANES) != 0:
        return _xla_path(loss, w0, out_dtype)

    # Lane-dense slab: (rows, 128) with no padding needed.
    rows = n // _LANES
    slab = loss.reshape(rows, _LANES)

    # Scalars for SMEM: exp(-w) hoisted out of the kernel.
    params = jnp.stack([jnp.exp(-w0), w0]).astype(jnp.float32)

    # Row-tile size: multiple of the sublane packing for this dtype, capped at
    # _MAX_TILE_ROWS (fits v5e's 16 MiB scoped-VMEM default double-buffered),
    # and shrunk so the grid has >= _MIN_GRID_STEPS steps when possible
    # (keeps both v7x TensorCores busy and the pipeline double-buffered).
    in_itemsize = jnp.dtype(loss.dtype).itemsize
    out_itemsize = jnp.dtype(out_dtype).itemsize
    align = _SUBLANES * max(1, 4 // in_itemsize)   # 8 for f32, 16 for bf16
    tile_r = min(max_tile_rows, _round_up(-(-rows // _MIN_GRID_STEPS), align))
    tile_r = max(align, min(tile_r, _round_up(rows, align)))
    grid = (pl.cdiv(rows, tile_r),)

    cost = pl.CostEstimate(
        flops=2 * rows * _LANES,
        transcendentals=0,
        bytes_accessed=rows * _LANES * (in_itemsize + out_itemsize),
    )

    out_slab = pl.pallas_call(
        _dlw_kernel,
        out_shape=jax.ShapeDtypeStruct((rows, _LANES), out_dtype),
        grid=grid,
        in_specs=[
            pl.BlockSpec(memory_space=pltpu.SMEM),             # [exp(-w), w]
            pl.BlockSpec((tile_r, _LANES), lambda i: (i, 0)),  # input row tile
        ],
        out_specs=pl.BlockSpec((tile_r, _LANES), lambda i: (i, 0)),
        compiler_params=pltpu.CompilerParams(
            dimension_semantics=("parallel",)),  # megacore split on v7x
        cost_estimate=cost,
    )(params, slab)

    return out_slab.reshape(orig_shape)


@jax.custom_vjp
def dynamic_loss_weighting(loss, loss_weight):
    """out = loss / exp(loss_weight) + loss_weight (elementwise)."""
    return _dlw_forward(loss, loss_weight)


def _dlw_vjp_fwd(loss, loss_weight):
    return _dlw_forward(loss, loss_weight), (loss, loss_weight)


def _dlw_vjp_bwd(res, g):
    loss, loss_weight = res
    loss = jnp.asarray(loss)
    w = jnp.asarray(loss_weight, dtype=jnp.float32)
    inv = jnp.exp(-w)
    g32 = jnp.asarray(g, dtype=jnp.float32)
    d_loss = (g32 * inv).astype(loss.dtype)
    d_w = jnp.sum(g32 * (1.0 - loss.astype(jnp.float32) * inv))
    d_w = d_w.astype(jnp.asarray(loss_weight).dtype).reshape(jnp.shape(loss_weight))
    return d_loss, d_w


dynamic_loss_weighting.defvjp(_dlw_vjp_fwd, _dlw_vjp_bwd)


if __name__ == "__main__":
    key = jax.random.PRNGKey(0)

    # nn.Parameter(torch.tensor(1.0)) equivalent.
    loss_weight = jnp.float32(1.0)

    # 1) f32 4-D loss, 2048 elements -> Pallas path (16 rows x 128 lanes).
    loss = jax.random.normal(key, (2, 4, 16, 16), dtype=jnp.float32)
    out = jax.block_until_ready(dynamic_loss_weighting(loss, loss_weight))
    ref = loss / jnp.exp(loss_weight) + loss_weight
    assert out.shape == loss.shape and out.dtype == ref.dtype
    assert jnp.allclose(out, ref, atol=1e-5, rtol=1e-5), "mismatch vs reference (f32)"

    # 2) Same input through a multi-block grid (max_tile_rows=8 -> 2 row tiles).
    out_grid = jax.block_until_ready(_dlw_forward(loss, loss_weight, max_tile_rows=8))
    assert jnp.allclose(out_grid, ref, atol=1e-5, rtol=1e-5), "mismatch (grid>1)"

    # 3) Flat size not divisible by 128 -> fused-XLA path (no pad/slice passes).
    k2, k3 = jax.random.split(key)
    loss2 = jax.random.normal(k2, (3, 700), dtype=jnp.float32)  # 2100 elements
    out2 = jax.block_until_ready(dynamic_loss_weighting(loss2, loss_weight))
    ref2 = loss2 / jnp.exp(loss_weight) + loss_weight
    assert jnp.allclose(out2, ref2, atol=1e-5, rtol=1e-5), "mismatch (ragged)"

    # 4) bf16 loss: DMA'd as bf16, cast inside the kernel, promoted to f32 output.
    loss_bf = jax.random.normal(k3, (4, 512), dtype=jnp.bfloat16)  # 2048 elements
    out_bf = jax.block_until_ready(dynamic_loss_weighting(loss_bf, loss_weight))
    ref_bf = loss_bf.astype(jnp.float32) / jnp.exp(loss_weight) + loss_weight
    assert out_bf.dtype == jnp.float32
    assert jnp.allclose(out_bf, ref_bf, atol=1e-3, rtol=1e-3), "mismatch (bf16)"

    # 5) Scalar loss -> small-input fast path (no pallas_call).
    scalar_loss = jnp.float32(0.75)
    out_s = jax.block_until_ready(dynamic_loss_weighting(scalar_loss, loss_weight))
    ref_s = scalar_loss / jnp.exp(loss_weight) + loss_weight
    assert jnp.allclose(out_s, ref_s, atol=1e-6), "mismatch (scalar)"

    # 6) Gradients (trainable loss_weight use case) via custom_vjp.
    g_loss, g_w = jax.grad(
        lambda l, w_: jnp.sum(dynamic_loss_weighting(l, w_)), argnums=(0, 1)
    )(loss, loss_weight)
    rg_loss, rg_w = jax.grad(
        lambda l, w_: jnp.sum(l / jnp.exp(w_) + w_), argnums=(0, 1)
    )(loss, loss_weight)
    assert jnp.allclose(g_loss, rg_loss, atol=1e-5, rtol=1e-5), "grad(loss) mismatch"
    assert jnp.allclose(g_w, rg_w, atol=1e-2, rtol=1e-3), "grad(weight) mismatch"

    print("KERNEL_OK")
</pallas_src>

<mosaic_0001>
module attributes {stable_mosaic.version = 11 : i64} {
  func.func @_dlw_kernel(%arg0: i32, %arg1: memref<2xf32, #tpu.memory_space<smem>>, %arg2: memref<8x128xf32, #tpu.memory_space<vmem>>, %arg3: memref<8x128xf32, #tpu.memory_space<vmem>>) attributes {dimension_semantics = [#tpu.dimension_semantics<parallel>], iteration_bounds = array<i64: 2>, scalar_prefetch = 0 : i64, scratch_operands = 0 : i64, tpu.core_type = #tpu.core_type<tc>, window_params = [{transform_indices = @transform_0, window_bounds = array<i64: 2>}, {transform_indices = @transform_1, window_bounds = array<i64: 8, 128>}, {transform_indices = @transform_2, window_bounds = array<i64: 8, 128>}]} {
    %c0 = arith.constant 0 : index
    %0 = memref.load %arg1[%c0] : memref<2xf32, #tpu.memory_space<smem>>
    %c1 = arith.constant 1 : index
    %1 = memref.load %arg1[%c1] : memref<2xf32, #tpu.memory_space<smem>>
    %c0_0 = arith.constant 0 : index
    %c0_1 = arith.constant 0 : index
    %2 = vector.load %arg2[%c0_0, %c0_1] : memref<8x128xf32, #tpu.memory_space<vmem>>, vector<8x128xf32>
    %3 = vector.broadcast %0 : f32 to vector<8x128xf32>
    %4 = arith.mulf %2, %3 : vector<8x128xf32>
    %5 = vector.broadcast %1 : f32 to vector<8x128xf32>
    %6 = arith.addf %4, %5 : vector<8x128xf32>
    %c0_2 = arith.constant 0 : index
    %c0_3 = arith.constant 0 : index
    %7 = vector.load %arg3[%c0_2, %c0_3] : memref<8x128xf32, #tpu.memory_space<vmem>>, vector<8x128xf32>
    tpu.vector_store %arg3[%c0_2, %c0_3], %6 {strides = array<i32>} : memref<8x128xf32, #tpu.memory_space<vmem>>, vector<8x128xf32>,
    return
  }
  func.func @transform_0(%arg0: i32) -> i32 {
    %c0_i32 = arith.constant 0 : i32
    %c0_i32_0 = arith.constant 0 : i32
    return %c0_i32 : i32
  }
  func.func @transform_1(%arg0: i32) -> (i32, i32) {
    %c0_i32 = arith.constant 0 : i32
    %c0_i32_0 = arith.constant 0 : i32
    return %arg0, %c0_i32 : i32, i32
  }
  func.func @transform_2(%arg0: i32) -> (i32, i32) {
    %c0_i32 = arith.constant 0 : i32
    %c0_i32_0 = arith.constant 0 : i32
    return %arg0, %c0_i32 : i32, i32
  }
}

</mosaic_0001>

<llo_original>
// kernel: tpu_custom_call.1
$region0: #{tpu_custom_call.1}
  #allocation0 [shape = 'u32[]', space=smem, size = 0x4, offset = 0x4, fixed_abs, tag = 'smem constant byte address 0x4 - core index']
  #allocation1 [shape = 'u32[144,128]{1,0:T(1,128)}', space=vmem, size = 0x12000, scoped, tag = 'internal scratch']
  %s0 = inlined_call_operand.hbm [shape: f32[2], index: 0, kind: input, shape index: {}]
  %s1 = inlined_call_operand.hbm [shape: f32[16,128], index: 1, kind: input, shape index: {}]
  %s2 = inlined_call_operand.hbm [shape: f32[16,128], index: 2, kind: output, shape index: {}]
  %s3 = sld [smem:[#allocation0]]
  $region49: #{tpu_custom_call.1} parent=0
    _
  %s5 = ssub.s32 1, %s3
  %s6 = scalar_select 0, %s5, %s3
  $region1: #{tpu_custom_call.1} parent=0
    #allocation2 [shape = 'u8[512]{0}', space=smem, size = 0x200, scoped, tag = 'input window, operand 0, single buffered']
    #allocation3 [shape = 's32[2]{0}', space=sflag, size = 0x8, scoped, tag = 'scoped memory for tpu_custom_call.1']
    #allocation4 [shape = 's32[2]{0}', space=sflag, size = 0x8, scoped, tag = 'scoped memory for tpu_custom_call.1']
    #allocation5 [shape = 's32[2]{0}', space=sflag, size = 0x8, scoped, tag = 'scoped memory for tpu_custom_call.1']
    #allocation6 [shape = 'u8[8192]{0}', space=vmem, size = 0x2000, scoped, tag = 'input window, operand 1']
    #allocation7 [shape = 'u8[8192]{0}', space=vmem, size = 0x2000, scoped, tag = 'output window, operand 0']
    %7 = vsyncpa [#allocation5], 0
    %8 = vsyncpa [#allocation3], 0
    %s9 = scalar_lea.sflag [#allocation3], 1
    %10 = vsyncpa %s9, 0
    %11 = vsyncpa [#allocation4], 0
    %s12 = scalar_lea.sflag [#allocation4], 1
    %13 = vsyncpa %s12, 0
    loop: start=0, step=1, limit=4
    $region2: #{tpu_custom_call.1} parent=1 // loop_pre_header
      _
    $region3: #{tpu_custom_call.1} parent=1 // loop_header
      %s15 = sphi 0, %s19
      %p16 = scmp.ge.s32.totalorder %s15, 4
      %s23 = sphi 0, %s23
      %s25 = sphi 0, %s23
      %s26 = sphi 0, %s25
      %s40 = sphi 0, %s26
      %s46 = sphi 0, %s48
      %s49 = sphi 0, %s46
      %s50 = sphi 0, %s49
      %s66 = sphi 0, %s50
      %s72 = sphi 0, %s74
      %s75 = sphi 0, %s72
      %s76 = sphi 0, %s75
      %s92 = sphi 0, %s76
    $region4: #{tpu_custom_call.1} parent=1 // loop_header_branch
      %18 = sbr.rel (%p16) target = $region8
    $region5: #{tpu_custom_call.1} parent=1 // loop_body
      %s20 = ssub.s32 %s15, 1
      %s21 = ssub.s32 %s15, 2
      %s22 = sadd.s32 %s15, 1
      %s24 = sadd.s32 %s23, 1
      %p27 = scmp.eq.s32.totalorder %s15, 1
      %p28 = scmp.ne.s32.totalorder %s23, %s25
      %p29 = scmp.eq.s32.totalorder %s15, 0
      %p30 = por %p28, %p29
      %p31 = scmp.ne.s32.totalorder %s23, %s25
      %p32 = scmp.eq.s32.totalorder %s20, 1
      %p33 = por %p31, %p32
      %p34 = scmp.ne.s32.totalorder %s25, %s26
      %p35 = scmp.eq.s32.totalorder %s20, 0
      %p36 = por %p34, %p35
      %p37 = scmp.ne.s32.totalorder %s25, %s26
      %p38 = scmp.eq.s32.totalorder %s21, 1
      %p39 = por %p37, %p38
      %p41 = scmp.ne.s32.totalorder %s26, %s40
      %p42 = scmp.eq.s32.totalorder %s21, 0
      %p43 = por %p41, %p42
      %s44 = ssub.s32 %s15, %s22
      %p45 = scmp.eq.s32.totalorder %s44, 0
      %s47 = sadd.s32 %s46, 1
      %s48 = scalar_select %p45, %s46, %s47
      %p51 = pneg %p45
      %p52 = scmp.eq.s32.totalorder %s15, 1
      %p53 = por %p51, %p52
      %p54 = scmp.ne.s32.totalorder %s46, %s49
      %p55 = scmp.eq.s32.totalorder %s15, 0
      %p56 = por %p54, %p55
      %p57 = scmp.ne.s32.totalorder %s46, %s49
      %p58 = scmp.eq.s32.totalorder %s20, 1
      %p59 = por %p57, %p58
      %p60 = scmp.ne.s32.totalorder %s49, %s50
      %p61 = scmp.eq.s32.totalorder %s20, 0
      %p62 = por %p60, %p61
      %p63 = scmp.ne.s32.totalorder %s49, %s50
      %p64 = scmp.eq.s32.totalorder %s21, 1
      %p65 = por %p63, %p64
      %p67 = scmp.ne.s32.totalorder %s50, %s66
      %p68 = scmp.eq.s32.totalorder %s21, 0
      %p69 = por %p67, %p68
      %s70 = ssub.s32 %s15, %s22
      %p71 = scmp.eq.s32.totalorder %s70, 0
      %s73 = sadd.s32 %s72, 1
      %s74 = scalar_select %p71, %s72, %s73
      %p77 = pneg %p71
      %p78 = scmp.eq.s32.totalorder %s15, 1
      %p79 = por %p77, %p78
      %p80 = scmp.ne.s32.totalorder %s72, %s75
      %p81 = scmp.eq.s32.totalorder %s15, 0
      %p82 = por %p80, %p81
      %p83 = scmp.ne.s32.totalorder %s72, %s75
      %p84 = scmp.eq.s32.totalorder %s20, 1
      %p85 = por %p83, %p84
      %p86 = scmp.ne.s32.totalorder %s75, %s76
      %p87 = scmp.eq.s32.totalorder %s20, 0
      %p88 = por %p86, %p87
      %p89 = scmp.ne.s32.totalorder %s75, %s76
      %p90 = scmp.eq.s32.totalorder %s21, 1
      %p91 = por %p89, %p90
      %p93 = scmp.ne.s32.totalorder %s76, %s92
      %p94 = scmp.eq.s32.totalorder %s21, 0
      %p95 = por %p93, %p94
      %p96 = scmp.le.s32.totalorder 1, %s15
      %p97 = scmp.lt.s32.totalorder %s15, 3
      %p98 = pnand %p96, %p97
      %p99 = pneg %p98
      // Predicated region
      $region9: #{tpu_custom_call.1} parent=5 // pred_check
        _
      $region10: #{tpu_custom_call.1} parent=5 // pred_check_branch
        %101 = sbr.rel (%p98) target = $region12
      $region11: #{tpu_custom_call.1} parent=5 // pred_region
        %s102 = ssub.s32 %s15, 1
        // Predicated region
        $region13: #{tpu_custom_call.1} parent=11 // pred_check
          %p103 = pneg %p36
        $region14: #{tpu_custom_call.1} parent=11 // pred_check_branch
          %105 = sbr.rel (%p103) target = $region16
        $region15: #{tpu_custom_call.1} parent=11 // pred_region
          %s107 = ssub.s32 16, 16
          %108 = vsyncadd [#allocation5], %s107
          %111 = dma.hbm_to_smem %s0, 16, [#allocation2], [#allocation5]
        $region16: #{tpu_custom_call.1} parent=11 // pred_fallthru
          _
      $region12: #{tpu_custom_call.1} parent=5 // pred_fallthru
        _
      %p112 = scmp.lt.s32.totalorder %s15, 2
      // Predicated region
      $region17: #{tpu_custom_call.1} parent=5 // pred_check
        %p113 = pneg %p112
      $region18: #{tpu_custom_call.1} parent=5 // pred_check_branch
        %115 = sbr.rel (%p113) target = $region20
      $region19: #{tpu_custom_call.1} parent=5 // pred_region
        // Predicated region
        $region21: #{tpu_custom_call.1} parent=19 // pred_check
          %p116 = pneg %p56
        $region22: #{tpu_custom_call.1} parent=19 // pred_check_branch
          %118 = sbr.rel (%p116) target = $region24
        $region23: #{tpu_custom_call.1} parent=19 // pred_region
          %s119 = sand.u32 %s46, 1
          %s120 = scalar_lea.sflag [#allocation3], %s119
          %s121 = sand.u32 %s46, 1
          %s122 = smul.addr %s121, 8
          %s123 = scalar_lea.vmem [#allocation6], %s122
          %s125 = ssub.s32 128, 128
          %126 = vsyncadd %s120, %s125
          %s127 = smul.addr %s15, 128
          %s128 = scalar_lea.hbm %s1, %s127
          %s130 = sshll.u32 %s123, 4
          %s131 = int_to_ptr.vmem [resolvable:$true] %s130
          %133 = dma.hbm_to_vmem [thread:$0]  %s128, 128, %s131, %s120
        $region24: #{tpu_custom_call.1} parent=19 // pred_fallthru
          _
      $region20: #{tpu_custom_call.1} parent=5 // pred_fallthru
        _
      %p134 = scmp.le.s32.totalorder 1, %s15
      %p135 = scmp.lt.s32.totalorder %s15, 3
      %p136 = pnand %p134, %p135
      %p137 = pneg %p136
      // Predicated region
      $region25: #{tpu_custom_call.1} parent=5 // pred_check
        _
      $region26: #{tpu_custom_call.1} parent=5 // pred_check_branch
        %139 = sbr.rel (%p136) target = $region28
      $region27: #{tpu_custom_call.1} parent=5 // pred_region
        %s140 = ssub.s32 %s15, 1
        // Predicated region
        $region29: #{tpu_custom_call.1} parent=27 // pred_check
          %p141 = pneg %p36
        $region30: #{tpu_custom_call.1} parent=27 // pred_check_branch
          %143 = sbr.rel (%p141) target = $region32
        $region31: #{tpu_custom_call.1} parent=27 // pred_region
          %144 = dma.done [#allocation5], 16
        $region32: #{tpu_custom_call.1} parent=27 // pred_fallthru
          _
        %s145 = sand.u32 %s49, 1
        %s146 = scalar_lea.sflag [#allocation3], %s145
        %s147 = sand.u32 %s49, 1
        %s148 = smul.addr %s147, 8
        %s149 = scalar_lea.vmem [#allocation6], %s148
        // Predicated region
        $region33: #{tpu_custom_call.1} parent=27 // pred_check
          %p150 = pneg %p62
        $region34: #{tpu_custom_call.1} parent=27 // pred_check_branch
          %152 = sbr.rel (%p150) target = $region36
        $region35: #{tpu_custom_call.1} parent=27 // pred_region
          %153 = dma.done %s146, 128
        $region36: #{tpu_custom_call.1} parent=27 // pred_fallthru
          _
        %154 = sfence
        %p155 = pneg %p36
        %p156 = pneg %p33
        %s157 = sand.u32 %s49, 1
        %s158 = scalar_lea.sflag [#allocation3], %s157
        %s159 = sand.u32 %s49, 1
        %s160 = smul.addr %s159, 8
        %s161 = scalar_lea.vmem [#allocation6], %s160
        %p162 = pneg %p62
        %p163 = pneg %p59
        %p164 = pneg %p88
        %p165 = pneg %p85
        %s166 = sand.u32 %s75, 1
        %s167 = scalar_lea.sflag [#allocation4], %s166
        %s168 = sand.u32 %s75, 1
        %s169 = smul.addr %s168, 8
        %s170 = scalar_lea.vmem [#allocation7], %s169
        %s171 = sld [smem:[#allocation2]]
        %s172 = sld [smem:[#allocation2 + $0x1]]
        %v173 = vld [vmem:[%s149] sm:$0xff]
        %v174 = vstv %s171
        %v175 = vmul.f32 %v173, %v174
        %v176 = vstv %s172
        %v177 = vadd.f32 %v175, %v176
        %178 = vst [vmem:[%s170] sm:$0xff] %v177
        %s179 = sand.u32 %s75, 1
        %s180 = scalar_lea.sflag [#allocation4], %s179
        %s181 = sand.u32 %s75, 1
        %s182 = smul.addr %s181, 8
        %s183 = scalar_lea.vmem [#allocation7], %s182
        // Predicated region
        $region37: #{tpu_custom_call.1} parent=27 // pred_check
          %p184 = pneg %p85
        $region38: #{tpu_custom_call.1} parent=27 // pred_check_branch
          %186 = sbr.rel (%p184) target = $region40
        $region39: #{tpu_custom_call.1} parent=27 // pred_region
          %s188 = ssub.s32 128, 128
          %189 = vsyncadd %s180, %s188
          %s190 = smul.addr %s20, 128
          %s191 = scalar_lea.hbm %s2, %s190
          %s193 = sshll.u32 %s183, 4
          %s194 = int_to_ptr.vmem [resolvable:$true] %s193
          %196 = dma.vmem_to_hbm [thread:$0]  %s194, 128, %s191, %s180
        $region40: #{tpu_custom_call.1} parent=27 // pred_fallthru
          _
      $region28: #{tpu_custom_call.1} parent=5 // pred_fallthru
        _
      %p197 = scmp.le.s32.totalorder 2, %s15
      // Predicated region
      $region41: #{tpu_custom_call.1} parent=5 // pred_check
        %p198 = pneg %p197
      $region42: #{tpu_custom_call.1} parent=5 // pred_check_branch
        %200 = sbr.rel (%p198) target = $region44
      $region43: #{tpu_custom_call.1} parent=5 // pred_region
        %s201 = ssub.s32 %s15, 2
        // Predicated region
        $region45: #{tpu_custom_call.1} parent=43 // pred_check
          %p202 = pneg %p91
        $region46: #{tpu_custom_call.1} parent=43 // pred_check_branch
          %204 = sbr.rel (%p202) target = $region48
        $region47: #{tpu_custom_call.1} parent=43 // pred_region
          %s205 = sand.u32 %s76, 1
          %s206 = scalar_lea.sflag [#allocation4], %s205
          %s207 = sand.u32 %s76, 1
          %s208 = smul.addr %s207, 8
          %s209 = scalar_lea.vmem [#allocation7], %s208
          %210 = dma.done %s206, 128
        $region48: #{tpu_custom_call.1} parent=43 // pred_fallthru
          _
      $region44: #{tpu_custom_call.1} parent=5 // pred_fallthru
        _
    $region6: #{tpu_custom_call.1} parent=1 // loop_footer
      %s19 = sadd.s32 1, %s15
    $region7: #{tpu_custom_call.1} parent=1 // loop_footer_branch
      %14 = sbr.rel target = $region3
    $region8: #{tpu_custom_call.1} parent=1 // loop_exit
      _
    %211 = vsyncpa [#allocation3], 1
    %s212 = scalar_lea.sflag [#allocation3], 1
    %213 = vsyncpa %s212, 1
    %214 = vsyncpa [#allocation4], 1
    %s215 = scalar_lea.sflag [#allocation4], 1
    %216 = vsyncpa %s215, 1
    %217 = vsyncpa [#allocation5], 1
    %s218 = scalar_lea.sflag [#allocation5], 1
    %219 = vsyncpa %s218, 1

</llo_original>
